<compile_context>
chip_gen: v5e
topology: v5e:2x2
jax: 0.10.0
libtpu: 0.0.40
codegen_flags: <defaults>
</compile_context>

<pallas_src>
import jax
import jax.numpy as jnp
from jax import lax
from jax.experimental import pallas as pl
from jax.experimental.pallas import tpu as pltpu


def _round_up(x, m):
    return (x + m - 1) // m * m


def _repack_gates(w, h, hp):
    """(..., 4H) in PyTorch gate order (i,f,g,o) -> (..., 4*Hp) in kernel order
    (i,f,o,g), each gate block zero-padded from H to Hp lanes."""
    i_, f_, g_, o_ = (w[..., 0:h], w[..., h:2 * h], w[..., 2 * h:3 * h], w[..., 3 * h:4 * h])
    pad = [(0, 0)] * (w.ndim - 1) + [(0, hp - h)]
    return jnp.concatenate([jnp.pad(b, pad) for b in (i_, f_, o_, g_)], axis=-1)


def _make_kernel(chunk_t, t_real, hp, needs_mask, unroll):
    def kernel(gx_ref, whh_ref, h_out_ref, h_ref, c_ref):
        t_idx = pl.program_id(1)
        n_t = pl.num_programs(1)

        @pl.when(t_idx == 0)
        def _():
            h_ref[...] = jnp.zeros_like(h_ref)
            c_ref[...] = jnp.zeros_like(c_ref)

        base_t = t_idx * chunk_t

        def step(t, carry):
            h, c = carry
            # Whh stays a bf16 VMEM ref read inside the step (no f32 hoist across
            # the unrolled body); the MXU accumulates in f32.
            gates = gx_ref[t] + jnp.dot(h.astype(whh_ref.dtype), whh_ref[...],
                                        preferred_element_type=jnp.float32)
            # gate layout (i, f, o, g); sigmoid(x) == 0.5*tanh(0.5*x) + 0.5 -> one
            # EUP op on one contiguous lane-aligned slab. Padded lanes are 0, so
            # i=f=o=0.5, g=0 and the zero-initialized padded h/c lanes stay 0.
            sg = 0.5 * jnp.tanh(0.5 * gates[:, 0:3 * hp]) + 0.5
            i_g = sg[:, 0:hp]
            f_g = sg[:, hp:2 * hp]
            o_g = sg[:, 2 * hp:3 * hp]
            g_g = jnp.tanh(gates[:, 3 * hp:4 * hp])
            c_new = f_g * c + i_g * g_g
            h_new = o_g * jnp.tanh(c_new)
            if needs_mask:  # static: only emitted when T was padded to a chunk multiple
                valid = (base_t + t) < t_real
                h_new = jnp.where(valid, h_new, h)
                c_new = jnp.where(valid, c_new, c)
            return (h_new, c_new)

        h, c = lax.fori_loop(0, chunk_t, step, (h_ref[...], c_ref[...]), unroll=unroll)
        h_ref[...] = h
        c_ref[...] = c

        @pl.when(t_idx == n_t - 1)
        def _():
            h_out_ref[...] = h

    return kernel


def lstm_seq_classifier(x_btf, params, *, chunk_t=32, batch_shards=1):
    """x_btf: (B, T, F) float32, like the PyTorch module's batch_first input.

    batch_shards=2 on v7x shards the serial recurrence across the two TensorCores
    via a leading "parallel" grid axis; it is also correct (just extra grid steps)
    on single-core chips.
    """
    B, T, F = x_btf.shape
    H = params["whh_t"].shape[0]
    eps = 1e-5

    Hp = _round_up(H, 128)
    Bp = _round_up(B, 8 * batch_shards)
    Bb = Bp // batch_shards

    # ---- chunk size: fit a conservative gx VMEM budget, then snap to a divisor of
    # T so the tail chunk is not masked busy-work (unless that shrinks ct too much).
    ct = max(1, min(chunk_t, T))
    gx_budget = 40 << 20                       # double-buffered gx chunks, v7x-safe
    while ct > 1 and 2 * ct * Bb * 4 * Hp * 4 > gx_budget:
        ct //= 2
    if T % ct != 0:
        div = next((d for d in range(ct, 0, -1) if T % d == 0), 1)
        if 2 * div >= ct:
            ct = div
    T_pad = _round_up(T, ct)
    needs_mask = (T_pad != T)

    # ---- BatchNorm1d (training-mode stats over B*T), single pass, folded into Wih/bias.
    xv = x_btf.reshape(B * T, F).astype(jnp.float32)
    mean = jnp.mean(xv, axis=0)
    var = jnp.maximum(jnp.mean(xv * xv, axis=0) - mean * mean, 0.0)   # biased variance
    scale = params["gamma"].reshape(F) * lax.rsqrt(var + eps)
    shift = params["beta"].reshape(F) - mean * scale

    wih_t = params["wih_t"]                                   # (F, 4H), order i,f,g,o
    wih_eff = wih_t * scale[:, None]                          # fold BN scale into rows
    b_eff = params["b_lstm"].reshape(4 * H) + shift @ wih_t   # fold BN shift into bias

    # ---- repack gates to (i,f,o,g) with Hp-wide lane-aligned zero-padded blocks.
    wih_k = _repack_gates(wih_eff, H, Hp).astype(jnp.bfloat16)          # (F, 4Hp)
    b_k = _repack_gates(b_eff, H, Hp).reshape(1, 4 * Hp)                # (1, 4Hp) f32
    whh_k = jnp.pad(_repack_gates(params["whh_t"], H, Hp),
                    ((0, Hp - H), (0, 0))).astype(jnp.bfloat16)         # (Hp, 4Hp)

    # ---- input projection precomputed in XLA as one bf16 GEMM w/ f32 accumulate;
    # the kernel only runs the recurrence and streams (ct, Bb, 4Hp) gx chunks.
    gx = jnp.dot(xv.astype(jnp.bfloat16), wih_k,
                 preferred_element_type=jnp.float32) + b_k              # (B*T, 4Hp)
    gx = gx.reshape(B, T, 4 * Hp).transpose(1, 0, 2)                    # (T, B, 4Hp)
    gx = jnp.pad(gx, ((0, T_pad - T), (0, Bp - B), (0, 0)))             # (T_pad,Bp,4Hp)

    # ---- derive vmem_limit_bytes from the actual footprint instead of hard-coding.
    est = (2 * ct * Bb * 4 * Hp * 4        # double-buffered gx chunks (f32)
           + 2 * Hp * 4 * Hp * 2           # double-buffered Whh (bf16)
           + 2 * Bb * Hp * 4               # h/c scratch carries
           + 2 * Bb * Hp * 4)              # double-buffered output
    vmem_limit = int(min(max(2 * est, 32 << 20), 100 << 20))

    kernel = _make_kernel(ct, T, Hp, needs_mask, unroll=min(8, ct))

    h_pad = pl.pallas_call(
        kernel,
        out_shape=jax.ShapeDtypeStruct((Bp, Hp), jnp.float32),
        grid_spec=pltpu.PrefetchScalarGridSpec(
            num_scalar_prefetch=0,
            grid=(batch_shards, T_pad // ct),
            in_specs=[
                pl.BlockSpec((ct, Bb, 4 * Hp), lambda s, t: (t, s, 0)),   # streamed gx
                pl.BlockSpec((Hp, 4 * Hp), lambda s, t: (0, 0)),          # Whh (bf16)
            ],
            out_specs=pl.BlockSpec((Bb, Hp), lambda s, t: (s, 0)),        # last-step h
            scratch_shapes=[
                pltpu.VMEM((Bb, Hp), jnp.float32),   # h carry
                pltpu.VMEM((Bb, Hp), jnp.float32),   # c carry
            ],
        ),
        compiler_params=pltpu.CompilerParams(
            dimension_semantics=("parallel", "arbitrary"),   # h/c carried across time
            vmem_limit_bytes=vmem_limit,
        ),
    )(gx, whh_k)

    # ---- classification head runs once -> plain XLA (weights never occupy VMEM).
    h_last = h_pad[:B, :H]
    z = jax.nn.gelu(h_last @ params["w1_t"] + params["b1"], approximate=False)
    return z @ params["w2_t"] + params["b2"]


def _reference(x_btf, params):
    """Pure-JAX f32 reference (unpadded, PyTorch gate order) for validation."""
    B, T, F = x_btf.shape
    H = params["whh_t"].shape[0]
    xv = x_btf.reshape(B * T, F)
    mean = jnp.mean(xv, axis=0, keepdims=True)
    var = jnp.mean((xv - mean) ** 2, axis=0, keepdims=True)
    xn = (x_btf - mean) / jnp.sqrt(var + 1e-5) * params["gamma"] + params["beta"]
    h = jnp.zeros((B, H), jnp.float32)
    c = jnp.zeros((B, H), jnp.float32)
    for t in range(T):
        gates = xn[:, t, :] @ params["wih_t"] + h @ params["whh_t"] + params["b_lstm"]
        i_g = jax.nn.sigmoid(gates[:, 0:H])
        f_g = jax.nn.sigmoid(gates[:, H:2 * H])
        g_g = jnp.tanh(gates[:, 2 * H:3 * H])
        o_g = jax.nn.sigmoid(gates[:, 3 * H:4 * H])
        c = f_g * c + i_g * g_g
        h = o_g * jnp.tanh(c)
    z = jax.nn.gelu(h @ params["w1_t"] + params["b1"], approximate=False)
    return z @ params["w2_t"] + params["b2"]


def init_params(key, num_features, num_units, num_labels):
    H, F, L = num_units, num_features, num_labels
    H2 = H // 2
    ks = jax.random.split(key, 10)
    k_lstm = 1.0 / jnp.sqrt(H)
    k_fc1 = 1.0 / jnp.sqrt(H)
    k_fc2 = 1.0 / jnp.sqrt(H2)

    def u(k, shape, bound):
        return jax.random.uniform(k, shape, jnp.float32, -bound, bound)

    # BatchNorm1d affine params (PyTorch default: weight=1, bias=0)
    gamma = jnp.ones((1, F), jnp.float32)
    beta = jnp.zeros((1, F), jnp.float32)
    # LSTM params, pre-transposed: weight_ih (4H,F) -> (F,4H); weight_hh (4H,H) -> (H,4H)
    wih_t = u(ks[0], (F, 4 * H), k_lstm)
    whh_t = u(ks[1], (H, 4 * H), k_lstm)
    b_lstm = u(ks[2], (1, 4 * H), k_lstm) + u(ks[3], (1, 4 * H), k_lstm)  # bias_ih + bias_hh
    # fc1: (H2, H) -> transposed (H, H2); fc2: (L, H2) -> (H2, L)
    w1_t = u(ks[4], (H, H2), k_fc1)
    b1 = u(ks[5], (1, H2), k_fc1)
    w2_t = u(ks[6], (H2, L), k_fc2)
    b2 = u(ks[7], (1, L), k_fc2)
    return dict(gamma=gamma, beta=beta, wih_t=wih_t, whh_t=whh_t, b_lstm=b_lstm,
                w1_t=w1_t, b1=b1, w2_t=w2_t, b2=b2)


if __name__ == "__main__":
    # Small shapes: batch=2, seq=8, num_features=4, num_units=32, num_labels=3
    B, T, F, H, L = 2, 8, 4, 32, 3
    key = jax.random.PRNGKey(0)
    k_x, k_p = jax.random.split(key)
    x = jax.random.normal(k_x, (B, T, F), jnp.float32)
    params = init_params(k_p, F, H, L)

    out = jax.block_until_ready(lstm_seq_classifier(x, params))
    ref = jax.block_until_ready(_reference(x, params))
    assert out.shape == (B, L)
    # bf16 MXU operands with f32 accumulation -> slightly looser tolerance than pure f32.
    assert jnp.allclose(out, ref, atol=3e-2, rtol=3e-2), (out, ref)
    print("KERNEL_OK")
</pallas_src>

<mosaic_0001>
module attributes {stable_mosaic.version = 11 : i64} {
  func.func @kernel(%arg0: i32, %arg1: i32, %arg2: memref<8x8x512xf32, #tpu.memory_space<vmem>>, %arg3: memref<128x512xbf16, #tpu.memory_space<vmem>>, %arg4: memref<8x128xf32, #tpu.memory_space<vmem>>, %arg5: memref<8x128xf32, #tpu.memory_space<vmem>>, %arg6: memref<8x128xf32, #tpu.memory_space<vmem>>) attributes {dimension_semantics = [#tpu.dimension_semantics<parallel>, #tpu.dimension_semantics<arbitrary>], iteration_bounds = array<i64: 1, 1>, scalar_prefetch = 0 : i64, scratch_operands = 2 : i64, tpu.core_type = #tpu.core_type<tc>, window_params = [{transform_indices = @transform_0, window_bounds = array<i64: 8, 8, 512>}, {pipeline_mode = #tpu.pipeline_mode<synchronous>, transform_indices = @transform_1, window_bounds = array<i64: 128, 512>}, {transform_indices = @transform_2, window_bounds = array<i64: 8, 128>}]} {
    %c0_i32 = arith.constant 0 : i32
    %0 = arith.cmpi eq, %arg1, %c0_i32 : i32
    %1 = arith.extui %0 : i1 to i32
    %c0_i32_0 = arith.constant 0 : i32
    %2 = arith.cmpi ne, %1, %c0_i32_0 : i32
    scf.if %2 {
      %cst_74 = arith.constant 0.000000e+00 : f32
      %210 = vector.broadcast %cst_74 : f32 to vector<8x128xf32>
      %c0_75 = arith.constant 0 : index
      %c0_76 = arith.constant 0 : index
      %211 = vector.load %arg5[%c0_75, %c0_76] : memref<8x128xf32, #tpu.memory_space<vmem>>, vector<8x128xf32>
      tpu.vector_store %arg5[%c0_75, %c0_76], %210 {strides = array<i32>} : memref<8x128xf32, #tpu.memory_space<vmem>>, vector<8x128xf32>,
      %cst_77 = arith.constant 0.000000e+00 : f32
      %212 = vector.broadcast %cst_77 : f32 to vector<8x128xf32>
      %c0_78 = arith.constant 0 : index
      %c0_79 = arith.constant 0 : index
      %213 = vector.load %arg6[%c0_78, %c0_79] : memref<8x128xf32, #tpu.memory_space<vmem>>, vector<8x128xf32>
      tpu.vector_store %arg6[%c0_78, %c0_79], %212 {strides = array<i32>} : memref<8x128xf32, #tpu.memory_space<vmem>>, vector<8x128xf32>,
    } else {
    }
    %c0 = arith.constant 0 : index
    %c0_1 = arith.constant 0 : index
    %3 = vector.load %arg5[%c0, %c0_1] : memref<8x128xf32, #tpu.memory_space<vmem>>, vector<8x128xf32>
    %c0_2 = arith.constant 0 : index
    %c0_3 = arith.constant 0 : index
    %4 = vector.load %arg6[%c0_2, %c0_3] : memref<8x128xf32, #tpu.memory_space<vmem>>, vector<8x128xf32>
    %c0_i32_4 = arith.constant 0 : i32
    %5 = arith.index_cast %c0_i32_4 : i32 to index
    %c0_5 = arith.constant 0 : index
    %c0_6 = arith.constant 0 : index
    %6 = vector.load %arg2[%5, %c0_5, %c0_6] : memref<8x8x512xf32, #tpu.memory_space<vmem>>, vector<1x8x512xf32>
    %7 = vector.shape_cast %6 : vector<1x8x512xf32> to vector<8x512xf32>
    %8 = arith.truncf %3 : vector<8x128xf32> to vector<8x128xbf16>
    %c0_7 = arith.constant 0 : index
    %c0_8 = arith.constant 0 : index
    %9 = vector.load %arg3[%c0_7, %c0_8] : memref<128x512xbf16, #tpu.memory_space<vmem>>, vector<128x512xbf16>
    %cst = arith.constant dense<0.000000e+00> : vector<8x512xf32>
    %10 = tpu.matmul %8, %9, %cst {dimension_numbers = #tpu.dot_dimension_numbers<[1], [0], [0], [1], [0, 0, 1, 1], [], []>} : vector<8x128xbf16>, vector<128x512xbf16>, vector<8x512xf32> -> vector<8x512xf32>
    %11 = arith.addf %7, %10 : vector<8x512xf32>
    %12 = vector.extract_strided_slice %11 {offsets = [0, 0], sizes = [8, 384], strides = [1, 1]} : vector<8x512xf32> to vector<8x384xf32>
    %cst_9 = arith.constant 5.000000e-01 : f32
    %13 = vector.broadcast %cst_9 : f32 to vector<8x384xf32>
    %14 = arith.mulf %13, %12 : vector<8x384xf32>
    %15 = math.tanh %14 : vector<8x384xf32>
    %cst_10 = arith.constant 5.000000e-01 : f32
    %16 = vector.broadcast %cst_10 : f32 to vector<8x384xf32>
    %17 = arith.mulf %16, %15 : vector<8x384xf32>
    %cst_11 = arith.constant 5.000000e-01 : f32
    %18 = vector.broadcast %cst_11 : f32 to vector<8x384xf32>
    %19 = arith.addf %17, %18 : vector<8x384xf32>
    %20 = vector.extract_strided_slice %19 {offsets = [0, 0], sizes = [8, 128], strides = [1, 1]} : vector<8x384xf32> to vector<8x128xf32>
    %21 = vector.extract_strided_slice %19 {offsets = [0, 128], sizes = [8, 128], strides = [1, 1]} : vector<8x384xf32> to vector<8x128xf32>
    %22 = vector.extract_strided_slice %19 {offsets = [0, 256], sizes = [8, 128], strides = [1, 1]} : vector<8x384xf32> to vector<8x128xf32>
    %23 = vector.extract_strided_slice %11 {offsets = [0, 384], sizes = [8, 128], strides = [1, 1]} : vector<8x512xf32> to vector<8x128xf32>
    %24 = math.tanh %23 : vector<8x128xf32>
    %25 = arith.mulf %21, %4 : vector<8x128xf32>
    %26 = arith.mulf %20, %24 : vector<8x128xf32>
    %27 = arith.addf %25, %26 : vector<8x128xf32>
    %28 = math.tanh %27 : vector<8x128xf32>
    %29 = arith.mulf %22, %28 : vector<8x128xf32>
    %c1_i32 = arith.constant 1 : i32
    %30 = arith.index_cast %c1_i32 : i32 to index
    %c0_12 = arith.constant 0 : index
    %c0_13 = arith.constant 0 : index
    %31 = vector.load %arg2[%30, %c0_12, %c0_13] : memref<8x8x512xf32, #tpu.memory_space<vmem>>, vector<1x8x512xf32>
    %32 = vector.shape_cast %31 : vector<1x8x512xf32> to vector<8x512xf32>
    %33 = arith.truncf %29 : vector<8x128xf32> to vector<8x128xbf16>
    %c0_14 = arith.constant 0 : index
    %c0_15 = arith.constant 0 : index
    %34 = vector.load %arg3[%c0_14, %c0_15] : memref<128x512xbf16, #tpu.memory_space<vmem>>, vector<128x512xbf16>
    %cst_16 = arith.constant dense<0.000000e+00> : vector<8x512xf32>
    %35 = tpu.matmul %33, %34, %cst_16 {dimension_numbers = #tpu.dot_dimension_numbers<[1], [0], [0], [1], [0, 0, 1, 1], [], []>} : vector<8x128xbf16>, vector<128x512xbf16>, vector<8x512xf32> -> vector<8x512xf32>
    %36 = arith.addf %32, %35 : vector<8x512xf32>
    %37 = vector.extract_strided_slice %36 {offsets = [0, 0], sizes = [8, 384], strides = [1, 1]} : vector<8x512xf32> to vector<8x384xf32>
    %cst_17 = arith.constant 5.000000e-01 : f32
    %38 = vector.broadcast %cst_17 : f32 to vector<8x384xf32>
    %39 = arith.mulf %38, %37 : vector<8x384xf32>
    %40 = math.tanh %39 : vector<8x384xf32>
    %cst_18 = arith.constant 5.000000e-01 : f32
    %41 = vector.broadcast %cst_18 : f32 to vector<8x384xf32>
    %42 = arith.mulf %41, %40 : vector<8x384xf32>
    %cst_19 = arith.constant 5.000000e-01 : f32
    %43 = vector.broadcast %cst_19 : f32 to vector<8x384xf32>
    %44 = arith.addf %42, %43 : vector<8x384xf32>
    %45 = vector.extract_strided_slice %44 {offsets = [0, 0], sizes = [8, 128], strides = [1, 1]} : vector<8x384xf32> to vector<8x128xf32>
    %46 = vector.extract_strided_slice %44 {offsets = [0, 128], sizes = [8, 128], strides = [1, 1]} : vector<8x384xf32> to vector<8x128xf32>
    %47 = vector.extract_strided_slice %44 {offsets = [0, 256], sizes = [8, 128], strides = [1, 1]} : vector<8x384xf32> to vector<8x128xf32>
    %48 = vector.extract_strided_slice %36 {offsets = [0, 384], sizes = [8, 128], strides = [1, 1]} : vector<8x512xf32> to vector<8x128xf32>
    %49 = math.tanh %48 : vector<8x128xf32>
    %50 = arith.mulf %46, %27 : vector<8x128xf32>
    %51 = arith.mulf %45, %49 : vector<8x128xf32>
    %52 = arith.addf %50, %51 : vector<8x128xf32>
    %53 = math.tanh %52 : vector<8x128xf32>
    %54 = arith.mulf %47, %53 : vector<8x128xf32>
    %c2_i32 = arith.constant 2 : i32
    %55 = arith.index_cast %c2_i32 : i32 to index
    %c0_20 = arith.constant 0 : index
    %c0_21 = arith.constant 0 : index
    %56 = vector.load %arg2[%55, %c0_20, %c0_21] : memref<8x8x512xf32, #tpu.memory_space<vmem>>, vector<1x8x512xf32>
    %57 = vector.shape_cast %56 : vector<1x8x512xf32> to vector<8x512xf32>
    %58 = arith.truncf %54 : vector<8x128xf32> to vector<8x128xbf16>
    %c0_22 = arith.constant 0 : index
    %c0_23 = arith.constant 0 : index
    %59 = vector.load %arg3[%c0_22, %c0_23] : memref<128x512xbf16, #tpu.memory_space<vmem>>, vector<128x512xbf16>
    %cst_24 = arith.constant dense<0.000000e+00> : vector<8x512xf32>
    %60 = tpu.matmul %58, %59, %cst_24 {dimension_numbers = #tpu.dot_dimension_numbers<[1], [0], [0], [1], [0, 0, 1, 1], [], []>} : vector<8x128xbf16>, vector<128x512xbf16>, vector<8x512xf32> -> vector<8x512xf32>
    %61 = arith.addf %57, %60 : vector<8x512xf32>
    %62 = vector.extract_strided_slice %61 {offsets = [0, 0], sizes = [8, 384], strides = [1, 1]} : vector<8x512xf32> to vector<8x384xf32>
    %cst_25 = arith.constant 5.000000e-01 : f32
    %63 = vector.broadcast %cst_25 : f32 to vector<8x384xf32>
    %64 = arith.mulf %63, %62 : vector<8x384xf32>
    %65 = math.tanh %64 : vector<8x384xf32>
    %cst_26 = arith.constant 5.000000e-01 : f32
    %66 = vector.broadcast %cst_26 : f32 to vector<8x384xf32>
    %67 = arith.mulf %66, %65 : vector<8x384xf32>
    %cst_27 = arith.constant 5.000000e-01 : f32
    %68 = vector.broadcast %cst_27 : f32 to vector<8x384xf32>
    %69 = arith.addf %67, %68 : vector<8x384xf32>
    %70 = vector.extract_strided_slice %69 {offsets = [0, 0], sizes = [8, 128], strides = [1, 1]} : vector<8x384xf32> to vector<8x128xf32>
    %71 = vector.extract_strided_slice %69 {offsets = [0, 128], sizes = [8, 128], strides = [1, 1]} : vector<8x384xf32> to vector<8x128xf32>
    %72 = vector.extract_strided_slice %69 {offsets = [0, 256], sizes = [8, 128], strides = [1, 1]} : vector<8x384xf32> to vector<8x128xf32>
    %73 = vector.extract_strided_slice %61 {offsets = [0, 384], sizes = [8, 128], strides = [1, 1]} : vector<8x512xf32> to vector<8x128xf32>
    %74 = math.tanh %73 : vector<8x128xf32>
    %75 = arith.mulf %71, %52 : vector<8x128xf32>
    %76 = arith.mulf %70, %74 : vector<8x128xf32>
    %77 = arith.addf %75, %76 : vector<8x128xf32>
    %78 = math.tanh %77 : vector<8x128xf32>
    %79 = arith.mulf %72, %78 : vector<8x128xf32>
    %c3_i32 = arith.constant 3 : i32
    %80 = arith.index_cast %c3_i32 : i32 to index
    %c0_28 = arith.constant 0 : index
    %c0_29 = arith.constant 0 : index
    %81 = vector.load %arg2[%80, %c0_28, %c0_29] : memref<8x8x512xf32, #tpu.memory_space<vmem>>, vector<1x8x512xf32>
    %82 = vector.shape_cast %81 : vector<1x8x512xf32> to vector<8x512xf32>
    %83 = arith.truncf %79 : vector<8x128xf32> to vector<8x128xbf16>
    %c0_30 = arith.constant 0 : index
    %c0_31 = arith.constant 0 : index
    %84 = vector.load %arg3[%c0_30, %c0_31] : memref<128x512xbf16, #tpu.memory_space<vmem>>, vector<128x512xbf16>
    %cst_32 = arith.constant dense<0.000000e+00> : vector<8x512xf32>
    %85 = tpu.matmul %83, %84, %cst_32 {dimension_numbers = #tpu.dot_dimension_numbers<[1], [0], [0], [1], [0, 0, 1, 1], [], []>} : vector<8x128xbf16>, vector<128x512xbf16>, vector<8x512xf32> -> vector<8x512xf32>
    %86 = arith.addf %82, %85 : vector<8x512xf32>
    %87 = vector.extract_strided_slice %86 {offsets = [0, 0], sizes = [8, 384], strides = [1, 1]} : vector<8x512xf32> to vector<8x384xf32>
    %cst_33 = arith.constant 5.000000e-01 : f32
    %88 = vector.broadcast %cst_33 : f32 to vector<8x384xf32>
    %89 = arith.mulf %88, %87 : vector<8x384xf32>
    %90 = math.tanh %89 : vector<8x384xf32>
    %cst_34 = arith.constant 5.000000e-01 : f32
    %91 = vector.broadcast %cst_34 : f32 to vector<8x384xf32>
    %92 = arith.mulf %91, %90 : vector<8x384xf32>
    %cst_35 = arith.constant 5.000000e-01 : f32
    %93 = vector.broadcast %cst_35 : f32 to vector<8x384xf32>
    %94 = arith.addf %92, %93 : vector<8x384xf32>
    %95 = vector.extract_strided_slice %94 {offsets = [0, 0], sizes = [8, 128], strides = [1, 1]} : vector<8x384xf32> to vector<8x128xf32>
    %96 = vector.extract_strided_slice %94 {offsets = [0, 128], sizes = [8, 128], strides = [1, 1]} : vector<8x384xf32> to vector<8x128xf32>
    %97 = vector.extract_strided_slice %94 {offsets = [0, 256], sizes = [8, 128], strides = [1, 1]} : vector<8x384xf32> to vector<8x128xf32>
    %98 = vector.extract_strided_slice %86 {offsets = [0, 384], sizes = [8, 128], strides = [1, 1]} : vector<8x512xf32> to vector<8x128xf32>
    %99 = math.tanh %98 : vector<8x128xf32>
    %100 = arith.mulf %96, %77 : vector<8x128xf32>
    %101 = arith.mulf %95, %99 : vector<8x128xf32>
    %102 = arith.addf %100, %101 : vector<8x128xf32>
    %103 = math.tanh %102 : vector<8x128xf32>
    %104 = arith.mulf %97, %103 : vector<8x128xf32>
    %c4_i32 = arith.constant 4 : i32
    %105 = arith.index_cast %c4_i32 : i32 to index
    %c0_36 = arith.constant 0 : index
    %c0_37 = arith.constant 0 : index
    %106 = vector.load %arg2[%105, %c0_36, %c0_37] : memref<8x8x512xf32, #tpu.memory_space<vmem>>, vector<1x8x512xf32>
    %107 = vector.shape_cast %106 : vector<1x8x512xf32> to vector<8x512xf32>
    %108 = arith.truncf %104 : vector<8x128xf32> to vector<8x128xbf16>
    %c0_38 = arith.constant 0 : index
    %c0_39 = arith.constant 0 : index
    %109 = vector.load %arg3[%c0_38, %c0_39] : memref<128x512xbf16, #tpu.memory_space<vmem>>, vector<128x512xbf16>
    %cst_40 = arith.constant dense<0.000000e+00> : vector<8x512xf32>
    %110 = tpu.matmul %108, %109, %cst_40 {dimension_numbers = #tpu.dot_dimension_numbers<[1], [0], [0], [1], [0, 0, 1, 1], [], []>} : vector<8x128xbf16>, vector<128x512xbf16>, vector<8x512xf32> -> vector<8x512xf32>
    %111 = arith.addf %107, %110 : vector<8x512xf32>
    %112 = vector.extract_strided_slice %111 {offsets = [0, 0], sizes = [8, 384], strides = [1, 1]} : vector<8x512xf32> to vector<8x384xf32>
    %cst_41 = arith.constant 5.000000e-01 : f32
    %113 = vector.broadcast %cst_41 : f32 to vector<8x384xf32>
    %114 = arith.mulf %113, %112 : vector<8x384xf32>
    %115 = math.tanh %114 : vector<8x384xf32>
    %cst_42 = arith.constant 5.000000e-01 : f32
    %116 = vector.broadcast %cst_42 : f32 to vector<8x384xf32>
    %117 = arith.mulf %116, %115 : vector<8x384xf32>
    %cst_43 = arith.constant 5.000000e-01 : f32
    %118 = vector.broadcast %cst_43 : f32 to vector<8x384xf32>
    %119 = arith.addf %117, %118 : vector<8x384xf32>
    %120 = vector.extract_strided_slice %119 {offsets = [0, 0], sizes = [8, 128], strides = [1, 1]} : vector<8x384xf32> to vector<8x128xf32>
    %121 = vector.extract_strided_slice %119 {offsets = [0, 128], sizes = [8, 128], strides = [1, 1]} : vector<8x384xf32> to vector<8x128xf32>
    %122 = vector.extract_strided_slice %119 {offsets = [0, 256], sizes = [8, 128], strides = [1, 1]} : vector<8x384xf32> to vector<8x128xf32>
    %123 = vector.extract_strided_slice %111 {offsets = [0, 384], sizes = [8, 128], strides = [1, 1]} : vector<8x512xf32> to vector<8x128xf32>
    %124 = math.tanh %123 : vector<8x128xf32>
    %125 = arith.mulf %121, %102 : vector<8x128xf32>
    %126 = arith.mulf %120, %124 : vector<8x128xf32>
    %127 = arith.addf %125, %126 : vector<8x128xf32>
    %128 = math.tanh %127 : vector<8x128xf32>
    %129 = arith.mulf %122, %128 : vector<8x128xf32>
    %c5_i32 = arith.constant 5 : i32
    %130 = arith.index_cast %c5_i32 : i32 to index
    %c0_44 = arith.constant 0 : index
    %c0_45 = arith.constant 0 : index
    %131 = vector.load %arg2[%130, %c0_44, %c0_45] : memref<8x8x512xf32, #tpu.memory_space<vmem>>, vector<1x8x512xf32>
    %132 = vector.shape_cast %131 : vector<1x8x512xf32> to vector<8x512xf32>
    %133 = arith.truncf %129 : vector<8x128xf32> to vector<8x128xbf16>
    %c0_46 = arith.constant 0 : index
    %c0_47 = arith.constant 0 : index
    %134 = vector.load %arg3[%c0_46, %c0_47] : memref<128x512xbf16, #tpu.memory_space<vmem>>, vector<128x512xbf16>
    %cst_48 = arith.constant dense<0.000000e+00> : vector<8x512xf32>
    %135 = tpu.matmul %133, %134, %cst_48 {dimension_numbers = #tpu.dot_dimension_numbers<[1], [0], [0], [1], [0, 0, 1, 1], [], []>} : vector<8x128xbf16>, vector<128x512xbf16>, vector<8x512xf32> -> vector<8x512xf32>
    %136 = arith.addf %132, %135 : vector<8x512xf32>
    %137 = vector.extract_strided_slice %136 {offsets = [0, 0], sizes = [8, 384], strides = [1, 1]} : vector<8x512xf32> to vector<8x384xf32>
    %cst_49 = arith.constant 5.000000e-01 : f32
    %138 = vector.broadcast %cst_49 : f32 to vector<8x384xf32>
    %139 = arith.mulf %138, %137 : vector<8x384xf32>
    %140 = math.tanh %139 : vector<8x384xf32>
    %cst_50 = arith.constant 5.000000e-01 : f32
    %141 = vector.broadcast %cst_50 : f32 to vector<8x384xf32>
    %142 = arith.mulf %141, %140 : vector<8x384xf32>
    %cst_51 = arith.constant 5.000000e-01 : f32
    %143 = vector.broadcast %cst_51 : f32 to vector<8x384xf32>
    %144 = arith.addf %142, %143 : vector<8x384xf32>
    %145 = vector.extract_strided_slice %144 {offsets = [0, 0], sizes = [8, 128], strides = [1, 1]} : vector<8x384xf32> to vector<8x128xf32>
    %146 = vector.extract_strided_slice %144 {offsets = [0, 128], sizes = [8, 128], strides = [1, 1]} : vector<8x384xf32> to vector<8x128xf32>
    %147 = vector.extract_strided_slice %144 {offsets = [0, 256], sizes = [8, 128], strides = [1, 1]} : vector<8x384xf32> to vector<8x128xf32>
    %148 = vector.extract_strided_slice %136 {offsets = [0, 384], sizes = [8, 128], strides = [1, 1]} : vector<8x512xf32> to vector<8x128xf32>
    %149 = math.tanh %148 : vector<8x128xf32>
    %150 = arith.mulf %146, %127 : vector<8x128xf32>
    %151 = arith.mulf %145, %149 : vector<8x128xf32>
    %152 = arith.addf %150, %151 : vector<8x128xf32>
    %153 = math.tanh %152 : vector<8x128xf32>
    %154 = arith.mulf %147, %153 : vector<8x128xf32>
    %c6_i32 = arith.constant 6 : i32
    %155 = arith.index_cast %c6_i32 : i32 to index
    %c0_52 = arith.constant 0 : index
    %c0_53 = arith.constant 0 : index
    %156 = vector.load %arg2[%155, %c0_52, %c0_53] : memref<8x8x512xf32, #tpu.memory_space<vmem>>, vector<1x8x512xf32>
    %157 = vector.shape_cast %156 : vector<1x8x512xf32> to vector<8x512xf32>
    %158 = arith.truncf %154 : vector<8x128xf32> to vector<8x128xbf16>
    %c0_54 = arith.constant 0 : index
    %c0_55 = arith.constant 0 : index
    %159 = vector.load %arg3[%c0_54, %c0_55] : memref<128x512xbf16, #tpu.memory_space<vmem>>, vector<128x512xbf16>
    %cst_56 = arith.constant dense<0.000000e+00> : vector<8x512xf32>
    %160 = tpu.matmul %158, %159, %cst_56 {dimension_numbers = #tpu.dot_dimension_numbers<[1], [0], [0], [1], [0, 0, 1, 1], [], []>} : vector<8x128xbf16>, vector<128x512xbf16>, vector<8x512xf32> -> vector<8x512xf32>
    %161 = arith.addf %157, %160 : vector<8x512xf32>
    %162 = vector.extract_strided_slice %161 {offsets = [0, 0], sizes = [8, 384], strides = [1, 1]} : vector<8x512xf32> to vector<8x384xf32>
    %cst_57 = arith.constant 5.000000e-01 : f32
    %163 = vector.broadcast %cst_57 : f32 to vector<8x384xf32>
    %164 = arith.mulf %163, %162 : vector<8x384xf32>
    %165 = math.tanh %164 : vector<8x384xf32>
    %cst_58 = arith.constant 5.000000e-01 : f32
    %166 = vector.broadcast %cst_58 : f32 to vector<8x384xf32>
    %167 = arith.mulf %166, %165 : vector<8x384xf32>
    %cst_59 = arith.constant 5.000000e-01 : f32
    %168 = vector.broadcast %cst_59 : f32 to vector<8x384xf32>
    %169 = arith.addf %167, %168 : vector<8x384xf32>
    %170 = vector.extract_strided_slice %169 {offsets = [0, 0], sizes = [8, 128], strides = [1, 1]} : vector<8x384xf32> to vector<8x128xf32>
    %171 = vector.extract_strided_slice %169 {offsets = [0, 128], sizes = [8, 128], strides = [1, 1]} : vector<8x384xf32> to vector<8x128xf32>
    %172 = vector.extract_strided_slice %169 {offsets = [0, 256], sizes = [8, 128], strides = [1, 1]} : vector<8x384xf32> to vector<8x128xf32>
    %173 = vector.extract_strided_slice %161 {offsets = [0, 384], sizes = [8, 128], strides = [1, 1]} : vector<8x512xf32> to vector<8x128xf32>
    %174 = math.tanh %173 : vector<8x128xf32>
    %175 = arith.mulf %171, %152 : vector<8x128xf32>
    %176 = arith.mulf %170, %174 : vector<8x128xf32>
    %177 = arith.addf %175, %176 : vector<8x128xf32>
    %178 = math.tanh %177 : vector<8x128xf32>
    %179 = arith.mulf %172, %178 : vector<8x128xf32>
    %c7_i32 = arith.constant 7 : i32
    %180 = arith.index_cast %c7_i32 : i32 to index
    %c0_60 = arith.constant 0 : index
    %c0_61 = arith.constant 0 : index
    %181 = vector.load %arg2[%180, %c0_60, %c0_61] : memref<8x8x512xf32, #tpu.memory_space<vmem>>, vector<1x8x512xf32>
    %182 = vector.shape_cast %181 : vector<1x8x512xf32> to vector<8x512xf32>
    %183 = arith.truncf %179 : vector<8x128xf32> to vector<8x128xbf16>
    %c0_62 = arith.constant 0 : index
    %c0_63 = arith.constant 0 : index
    %184 = vector.load %arg3[%c0_62, %c0_63] : memref<128x512xbf16, #tpu.memory_space<vmem>>, vector<128x512xbf16>
    %cst_64 = arith.constant dense<0.000000e+00> : vector<8x512xf32>
    %185 = tpu.matmul %183, %184, %cst_64 {dimension_numbers = #tpu.dot_dimension_numbers<[1], [0], [0], [1], [0, 0, 1, 1], [], []>} : vector<8x128xbf16>, vector<128x512xbf16>, vector<8x512xf32> -> vector<8x512xf32>
    %186 = arith.addf %182, %185 : vector<8x512xf32>
    %187 = vector.extract_strided_slice %186 {offsets = [0, 0], sizes = [8, 384], strides = [1, 1]} : vector<8x512xf32> to vector<8x384xf32>
    %cst_65 = arith.constant 5.000000e-01 : f32
    %188 = vector.broadcast %cst_65 : f32 to vector<8x384xf32>
    %189 = arith.mulf %188, %187 : vector<8x384xf32>
    %190 = math.tanh %189 : vector<8x384xf32>
    %cst_66 = arith.constant 5.000000e-01 : f32
    %191 = vector.broadcast %cst_66 : f32 to vector<8x384xf32>
    %192 = arith.mulf %191, %190 : vector<8x384xf32>
    %cst_67 = arith.constant 5.000000e-01 : f32
    %193 = vector.broadcast %cst_67 : f32 to vector<8x384xf32>
    %194 = arith.addf %192, %193 : vector<8x384xf32>
    %195 = vector.extract_strided_slice %194 {offsets = [0, 0], sizes = [8, 128], strides = [1, 1]} : vector<8x384xf32> to vector<8x128xf32>
    %196 = vector.extract_strided_slice %194 {offsets = [0, 128], sizes = [8, 128], strides = [1, 1]} : vector<8x384xf32> to vector<8x128xf32>
    %197 = vector.extract_strided_slice %194 {offsets = [0, 256], sizes = [8, 128], strides = [1, 1]} : vector<8x384xf32> to vector<8x128xf32>
    %198 = vector.extract_strided_slice %186 {offsets = [0, 384], sizes = [8, 128], strides = [1, 1]} : vector<8x512xf32> to vector<8x128xf32>
    %199 = math.tanh %198 : vector<8x128xf32>
    %200 = arith.mulf %196, %177 : vector<8x128xf32>
    %201 = arith.mulf %195, %199 : vector<8x128xf32>
    %202 = arith.addf %200, %201 : vector<8x128xf32>
    %203 = math.tanh %202 : vector<8x128xf32>
    %204 = arith.mulf %197, %203 : vector<8x128xf32>
    %c8_i32 = arith.constant 8 : i32
    %c0_68 = arith.constant 0 : index
    %c0_69 = arith.constant 0 : index
    %205 = vector.load %arg5[%c0_68, %c0_69] : memref<8x128xf32, #tpu.memory_space<vmem>>, vector<8x128xf32>
    tpu.vector_store %arg5[%c0_68, %c0_69], %204 {strides = array<i32>} : memref<8x128xf32, #tpu.memory_space<vmem>>, vector<8x128xf32>,
    %c0_70 = arith.constant 0 : index
    %c0_71 = arith.constant 0 : index
    %206 = vector.load %arg6[%c0_70, %c0_71] : memref<8x128xf32, #tpu.memory_space<vmem>>, vector<8x128xf32>
    tpu.vector_store %arg6[%c0_70, %c0_71], %202 {strides = array<i32>} : memref<8x128xf32, #tpu.memory_space<vmem>>, vector<8x128xf32>,
    %c0_i32_72 = arith.constant 0 : i32
    %207 = arith.cmpi eq, %arg1, %c0_i32_72 : i32
    %208 = arith.extui %207 : i1 to i32
    %c0_i32_73 = arith.constant 0 : i32
    %209 = arith.cmpi ne, %208, %c0_i32_73 : i32
    scf.if %209 {
      %c0_74 = arith.constant 0 : index
      %c0_75 = arith.constant 0 : index
      %210 = vector.load %arg4[%c0_74, %c0_75] : memref<8x128xf32, #tpu.memory_space<vmem>>, vector<8x128xf32>
      tpu.vector_store %arg4[%c0_74, %c0_75], %204 {strides = array<i32>} : memref<8x128xf32, #tpu.memory_space<vmem>>, vector<8x128xf32>,
    } else {
    }
    return
  }
  func.func @transform_0(%arg0: i32, %arg1: i32) -> (i32, i32, i32) {
    %c0_i32 = arith.constant 0 : i32
    %c0_i32_0 = arith.constant 0 : i32
    return %arg1, %arg0, %c0_i32 : i32, i32, i32
  }
  func.func @transform_1(%arg0: i32, %arg1: i32) -> (i32, i32) {
    %c0_i32 = arith.constant 0 : i32
    %c0_i32_0 = arith.constant 0 : i32
    %c0_i32_1 = arith.constant 0 : i32
    return %c0_i32, %c0_i32_0 : i32, i32
  }
  func.func @transform_2(%arg0: i32, %arg1: i32) -> (i32, i32) {
    %c0_i32 = arith.constant 0 : i32
    %c0_i32_0 = arith.constant 0 : i32
    return %arg0, %c0_i32 : i32, i32
  }
}

</mosaic_0001>

<llo_original>
// kernel: tpu_custom_call.1
$region0: #{tpu_custom_call.1}
  #allocation0 [shape = 'u32[]', space=smem, size = 0x4, offset = 0x4, fixed_abs, tag = 'smem constant byte address 0x4 - core index']
  #allocation1 [shape = 'u32[72,128]{1,0:T(1,128)}', space=vmem, size = 0x9000, scoped, tag = 'internal scratch']
  #allocation2 [shape = 'f32[8,128]{1,0:T(8,128)}', space=vmem, size = 0x1000, scoped, tag = 'scratch operand']
  #allocation3 [shape = 'f32[8,128]{1,0:T(8,128)}', space=vmem, size = 0x1000, scoped, tag = 'scratch operand']
  %s0 = inlined_call_operand.hbm [shape: f32[8,8,512], index: 0, kind: input, shape index: {}]
  %s1 = inlined_call_operand.hbm [shape: bf16[128,512], index: 1, kind: input, shape index: {}]
  %s2 = inlined_call_operand.hbm [shape: f32[8,128], index: 2, kind: output, shape index: {}]
  %s3 = sld [smem:[#allocation0]]
  $region34: #{tpu_custom_call.1} parent=0
    _
  %s5 = ssub.s32 1, %s3
  %s6 = scalar_select 0, %s5, %s3
  $region1: #{tpu_custom_call.1} parent=0
    #allocation4 [shape = 'u8[131072]{0}', space=vmem, size = 0x20000, scoped, tag = 'input window, operand 0, single buffered']
    #allocation5 [shape = 's32[1]{0}', space=sflag, size = 0x4, scoped, tag = 'scoped memory for tpu_custom_call.1']
    #allocation6 [shape = 's32[1]{0}', space=sflag, size = 0x4, scoped, tag = 'scoped memory for tpu_custom_call.1']
    #allocation7 [shape = 'u8[131072]{0}', space=vmem, size = 0x20000, scoped, tag = 'input window, operand 1, single buffered']
    #allocation8 [shape = 's32[1]{0}', space=sflag, size = 0x4, scoped, tag = 'scoped memory for tpu_custom_call.1']
    #allocation9 [shape = 'u8[4096]{0}', space=vmem, size = 0x1000, scoped, tag = 'output window, operand 0, single buffered']
    %7 = vsyncpa [#allocation5], 0
    %8 = vsyncpa [#allocation8], 0
    %9 = vsyncpa [#allocation6], 0
    // Predicated region
    $region2: #{tpu_custom_call.1} parent=1 // pred_check
      _
    $region3: #{tpu_custom_call.1} parent=1 // pred_check_branch
      %11 = sbr.rel (0) target = $region5
    $region4: #{tpu_custom_call.1} parent=1 // pred_region
      %13 = vsyncadd [#allocation5], 0
      %s14 = sshll.u32 %s0, 4
      %s15 = int_to_ptr.hbm [resolvable:$true] %s14
      %s16 = sshll.u32 [#allocation4], 4
      %s17 = int_to_ptr.vmem [resolvable:$true] %s16
      %22 = dma.hbm_to_vmem [thread:$0]  %s15, 4096, %s17, [#allocation5], 512, 512, 32
    $region5: #{tpu_custom_call.1} parent=1 // pred_fallthru
      _
    // Predicated region
    $region6: #{tpu_custom_call.1} parent=1 // pred_check
      _
    $region7: #{tpu_custom_call.1} parent=1 // pred_check_branch
      %24 = sbr.rel (0) target = $region9
    $region8: #{tpu_custom_call.1} parent=1 // pred_region
      %26 = vsyncadd [#allocation8], 0
      %s27 = sshll.u32 %s1, 4
      %s28 = int_to_ptr.hbm [resolvable:$true] %s27
      %s29 = sshll.u32 [#allocation7], 4
      %s30 = int_to_ptr.vmem [resolvable:$true] %s29
      %35 = dma.hbm_to_vmem [thread:$0]  %s28, 4096, %s30, [#allocation8], 256, 256, 16
    $region9: #{tpu_custom_call.1} parent=1 // pred_fallthru
      _
    // Predicated region
    $region10: #{tpu_custom_call.1} parent=1 // pred_check
      _
    $region11: #{tpu_custom_call.1} parent=1 // pred_check_branch
      %37 = sbr.rel (0) target = $region13
    $region12: #{tpu_custom_call.1} parent=1 // pred_region
      %39 = dma.done [#allocation5], 4096
    $region13: #{tpu_custom_call.1} parent=1 // pred_fallthru
      _
    // Predicated region
    $region14: #{tpu_custom_call.1} parent=1 // pred_check
      _
    $region15: #{tpu_custom_call.1} parent=1 // pred_check_branch
      %41 = sbr.rel (0) target = $region17
    $region16: #{tpu_custom_call.1} parent=1 // pred_region
      %43 = dma.done [#allocation8], 4096
    $region17: #{tpu_custom_call.1} parent=1 // pred_fallthru
      _
    %p44 = scmp.eq.s32.totalorder 0, 0
    // Predicated region
    $region18: #{tpu_custom_call.1} parent=1 // pred_check
      %p45 = pneg %p44
    $region19: #{tpu_custom_call.1} parent=1 // pred_check_branch
      %47 = sbr.rel (%p45) target = $region21
    $region20: #{tpu_custom_call.1} parent=1 // pred_region
      %48 = vst [vmem:[#allocation2] sm:$0xff] 0.0
      %49 = vst [vmem:[#allocation3] sm:$0xff] 0.0
    $region21: #{tpu_custom_call.1} parent=1 // pred_fallthru
      _
    %v50 = vld [vmem:[#allocation2] sm:$0xff]
    %v51 = vld [vmem:[#allocation3] sm:$0xff]
    %v52 = vld [vmem:[#allocation4] sm:$0xff]
    %v53 = vld [vmem:[#allocation4 + $0x8] sm:$0xff]
    %v54 = vld [vmem:[#allocation4 + $0x10] sm:$0xff]
    %v55 = vld [vmem:[#allocation4 + $0x18] sm:$0xff]
    %v56 = vpack.c.bf16 %v50, %v50
    %v57 = vld [vmem:[#allocation7] sm:$0xff]
    %v58 = vld [vmem:[#allocation7 + $0x8] sm:$0xff]
    %v59 = vld [vmem:[#allocation7 + $0x10] sm:$0xff]
    %v60 = vld [vmem:[#allocation7 + $0x18] sm:$0xff]
    %v61 = vld [vmem:[#allocation7 + $0x20] sm:$0xff]
    %v62 = vld [vmem:[#allocation7 + $0x28] sm:$0xff]
    %v63 = vld [vmem:[#allocation7 + $0x30] sm:$0xff]
    %v64 = vld [vmem:[#allocation7 + $0x38] sm:$0xff]
    %v65 = vld [vmem:[#allocation7 + $0x40] sm:$0xff]
    %v66 = vld [vmem:[#allocation7 + $0x48] sm:$0xff]
    %v67 = vld [vmem:[#allocation7 + $0x50] sm:$0xff]
    %v68 = vld [vmem:[#allocation7 + $0x58] sm:$0xff]
    %v69 = vld [vmem:[#allocation7 + $0x60] sm:$0xff]
    %v70 = vld [vmem:[#allocation7 + $0x68] sm:$0xff]
    %v71 = vld [vmem:[#allocation7 + $0x70] sm:$0xff]
    %v72 = vld [vmem:[#allocation7 + $0x78] sm:$0xff]
    %v73 = vld [vmem:[#allocation7 + $0x80] sm:$0xff]
    %v74 = vld [vmem:[#allocation7 + $0x88] sm:$0xff]
    %v75 = vld [vmem:[#allocation7 + $0x90] sm:$0xff]
    %v76 = vld [vmem:[#allocation7 + $0x98] sm:$0xff]
    %v77 = vld [vmem:[#allocation7 + $0xa0] sm:$0xff]
    %v78 = vld [vmem:[#allocation7 + $0xa8] sm:$0xff]
    %v79 = vld [vmem:[#allocation7 + $0xb0] sm:$0xff]
    %v80 = vld [vmem:[#allocation7 + $0xb8] sm:$0xff]
    %v81 = vld [vmem:[#allocation7 + $0xc0] sm:$0xff]
    %v82 = vld [vmem:[#allocation7 + $0xc8] sm:$0xff]
    %v83 = vld [vmem:[#allocation7 + $0xd0] sm:$0xff]
    %v84 = vld [vmem:[#allocation7 + $0xd8] sm:$0xff]
    %v85 = vld [vmem:[#allocation7 + $0xe0] sm:$0xff]
    %v86 = vld [vmem:[#allocation7 + $0xe8] sm:$0xff]
    %v87 = vld [vmem:[#allocation7 + $0xf0] sm:$0xff]
    %v88 = vld [vmem:[#allocation7 + $0xf8] sm:$0xff]
    %v121 = vunpack.c.l.b16 %v57
    %v122 = vunpack.c.h.b16 %v57
    %v123 = vunpack.c.l.b16 %v58
    %v124 = vunpack.c.h.b16 %v58
    %v125 = vunpack.c.l.b16 %v59
    %v126 = vunpack.c.h.b16 %v59
    %v127 = vunpack.c.l.b16 %v60
    %v128 = vunpack.c.h.b16 %v60
    %v129 = vunpack.c.l.b16 %v61
    %v130 = vunpack.c.h.b16 %v61
    %v131 = vunpack.c.l.b16 %v62
    %v132 = vunpack.c.h.b16 %v62
    %v133 = vunpack.c.l.b16 %v63
    %v134 = vunpack.c.h.b16 %v63
    %v135 = vunpack.c.l.b16 %v64
    %v136 = vunpack.c.h.b16 %v64
    %v137 = vunpack.c.l.b16 %v65
    %v138 = vunpack.c.h.b16 %v65
    %v139 = vunpack.c.l.b16 %v66
    %v140 = vunpack.c.h.b16 %v66
    %v141 = vunpack.c.l.b16 %v67
    %v142 = vunpack.c.h.b16 %v67
    %v143 = vunpack.c.l.b16 %v68
    %v144 = vunpack.c.h.b16 %v68
    %v145 = vunpack.c.l.b16 %v69
    %v146 = vunpack.c.h.b16 %v69
    %v147 = vunpack.c.l.b16 %v70
    %v148 = vunpack.c.h.b16 %v70
    %v149 = vunpack.c.l.b16 %v71
    %v150 = vunpack.c.h.b16 %v71
    %v151 = vunpack.c.l.b16 %v72
    %v152 = vunpack.c.h.b16 %v72
    %v153 = vunpack.c.l.b16 %v73
    %v154 = vunpack.c.h.b16 %v73
    %v155 = vunpack.c.l.b16 %v74
    %v156 = vunpack.c.h.b16 %v74
    %v157 = vunpack.c.l.b16 %v75
    %v158 = vunpack.c.h.b16 %v75
    %v159 = vunpack.c.l.b16 %v76
    %v160 = vunpack.c.h.b16 %v76
    %v161 = vunpack.c.l.b16 %v77
    %v162 = vunpack.c.h.b16 %v77
    %v163 = vunpack.c.l.b16 %v78
    %v164 = vunpack.c.h.b16 %v78
    %v165 = vunpack.c.l.b16 %v79
    %v166 = vunpack.c.h.b16 %v79
    %v167 = vunpack.c.l.b16 %v80
    %v168 = vunpack.c.h.b16 %v80
    %v169 = vunpack.c.l.b16 %v81
    %v170 = vunpack.c.h.b16 %v81
    %v171 = vunpack.c.l.b16 %v82
    %v172 = vunpack.c.h.b16 %v82
    %v173 = vunpack.c.l.b16 %v83
    %v174 = vunpack.c.h.b16 %v83
    %v175 = vunpack.c.l.b16 %v84
    %v176 = vunpack.c.h.b16 %v84
    %v177 = vunpack.c.l.b16 %v85
    %v178 = vunpack.c.h.b16 %v85
    %v179 = vunpack.c.l.b16 %v86
    %v180 = vunpack.c.h.b16 %v86
    %v181 = vunpack.c.l.b16 %v87
    %v182 = vunpack.c.h.b16 %v87
    %v183 = vunpack.c.l.b16 %v88
    %v184 = vunpack.c.h.b16 %v88
    %v185 = vpack.c.b16 %v125, %v121
    %v186 = vpack.c.b16 %v126, %v122
    %v187 = vpack.c.b16 %v127, %v123
    %v188 = vpack.c.b16 %v128, %v124
    %v189 = vpack.c.b16 %v133, %v129
    %v190 = vpack.c.b16 %v134, %v130
    %v191 = vpack.c.b16 %v135, %v131
    %v192 = vpack.c.b16 %v136, %v132
    %v193 = vpack.c.b16 %v141, %v137
    %v194 = vpack.c.b16 %v142, %v138
    %v195 = vpack.c.b16 %v143, %v139
    %v196 = vpack.c.b16 %v144, %v140
    %v197 = vpack.c.b16 %v149, %v145
    %v198 = vpack.c.b16 %v150, %v146
    %v199 = vpack.c.b16 %v151, %v147
    %v200 = vpack.c.b16 %v152, %v148
    %v201 = vpack.c.b16 %v157, %v153
    %v202 = vpack.c.b16 %v158, %v154
    %v203 = vpack.c.b16 %v159, %v155
    %v204 = vpack.c.b16 %v160, %v156
    %v205 = vpack.c.b16 %v165, %v161
    %v206 = vpack.c.b16 %v166, %v162
    %v207 = vpack.c.b16 %v167, %v163
    %v208 = vpack.c.b16 %v168, %v164
    %v209 = vpack.c.b16 %v173, %v169
    %v210 = vpack.c.b16 %v174, %v170
    %v211 = vpack.c.b16 %v175, %v171
    %v212 = vpack.c.b16 %v176, %v172
    %v213 = vpack.c.b16 %v181, %v177
    %v214 = vpack.c.b16 %v182, %v178
    %v215 = vpack.c.b16 %v183, %v179
    %v216 = vpack.c.b16 %v184, %v180
    %249 = vmatpush.bf16.msra.mxu0 %v213
    %250 = vmatpush.bf16.msra.mxu0 %v209
    %251 = vmatpush.bf16.msra.mxu0 %v205
    %252 = vmatpush.bf16.msra.mxu0 %v201
    %253 = vmatpush.bf16.msra.mxu0 %v197
    %254 = vmatpush.bf16.msra.mxu0 %v193
    %255 = vmatpush.bf16.msra.mxu0 %v189
    %256 = vmatpush.bf16.msra.mxu0 %v185
    %257 = vmatmul.bf16.gmra.mxu0 %v56
    %v258 = vpop.f32.mrf.mxu0
    %v259 = vadd.f32 0.0, %v258
    %v260 = vpop.f32.mrf.mxu0
    %261 = vdwg.mxu0
    %262 = vmatpush.bf16.msra.mxu0 %v214
    %263 = vmatpush.bf16.msra.mxu0 %v210
    %264 = vmatpush.bf16.msra.mxu0 %v206
    %265 = vmatpush.bf16.msra.mxu0 %v202
    %266 = vmatpush.bf16.msra.mxu0 %v198
    %267 = vmatpush.bf16.msra.mxu0 %v194
    %268 = vmatpush.bf16.msra.mxu0 %v190
    %269 = vmatpush.bf16.msra.mxu0 %v186
    %270 = vmatmul.bf16.gmra.mxu0 %v56
    %v271 = vpop.f32.mrf.mxu0
    %v272 = vadd.f32 0.0, %v271
    %v273 = vpop.f32.mrf.mxu0
    %274 = vdwg.mxu0
    %275 = vmatpush.bf16.msra.mxu0 %v215
    %276 = vmatpush.bf16.msra.mxu0 %v211
    %277 = vmatpush.bf16.msra.mxu0 %v207
    %278 = vmatpush.bf16.msra.mxu0 %v203
    %279 = vmatpush.bf16.msra.mxu0 %v199
    %280 = vmatpush.bf16.msra.mxu0 %v195
    %281 = vmatpush.bf16.msra.mxu0 %v191
    %282 = vmatpush.bf16.msra.mxu0 %v187
    %283 = vmatmul.bf16.gmra.mxu0 %v56
    %v284 = vpop.f32.mrf.mxu0
    %v285 = vadd.f32 0.0, %v284
    %v286 = vpop.f32.mrf.mxu0
    %287 = vdwg.mxu0
    %288 = vmatpush.bf16.msra.mxu0 %v216
    %289 = vmatpush.bf16.msra.mxu0 %v212
    %290 = vmatpush.bf16.msra.mxu0 %v208
    %291 = vmatpush.bf16.msra.mxu0 %v204
    %292 = vmatpush.bf16.msra.mxu0 %v200
    %293 = vmatpush.bf16.msra.mxu0 %v196
    %294 = vmatpush.bf16.msra.mxu0 %v192
    %295 = vmatpush.bf16.msra.mxu0 %v188
    %296 = vmatmul.bf16.gmra.mxu0 %v56
    %v297 = vpop.f32.mrf.mxu0
    %v298 = vadd.f32 0.0, %v297
    %v299 = vpop.f32.mrf.mxu0
    %300 = vdwg.mxu0
    %v301 = vadd.f32 %v52, %v259
    %v302 = vadd.f32 %v53, %v272
    %v303 = vadd.f32 %v54, %v285
    %v304 = vadd.f32 %v55, %v298
    %v305 = vmul.f32 %v301, 0.5
    %v306 = vmul.f32 %v302, 0.5
    %v307 = vmul.f32 %v303, 0.5
    %v308 = vtanh.pop %v305
    %v309 = vtanh.pop %v306
    %v310 = vtanh.pop %v307
    %v311 = vmul.f32 %v308, 0.5
    %v312 = vmul.f32 %v309, 0.5
    %v313 = vmul.f32 %v310, 0.5
    %v314 = vadd.f32 %v311, 0.5
    %v315 = vadd.f32 %v312, 0.5
    %v316 = vadd.f32 %v313, 0.5
    %v317 = vtanh.pop %v304
    %v318 = vmul.f32 %v315, %v51
    %v319 = vmul.f32 %v314, %v317
    %v320 = vadd.f32 %v318, %v319
    %v321 = vtanh.pop %v320
    %v322 = vmul.f32 %v316, %v321
    %s323 = scalar_lea.vmem [#allocation4], 32
    %v324 = vld [vmem:[%s323] sm:$0xff]
    %v325 = vld [vmem:[%s323 + $0x8] sm:$0xff]
    %v326 = vld [vmem:[%s323 + $0x10] sm:$0xff]
    %v327 = vld [vmem:[%s323 + $0x18] sm:$0xff]
    %v328 = vpack.c.bf16 %v322, %v322
    %329 = vmatpush.bf16.msra.mxu0 %v213
    %330 = vmatpush.bf16.msra.mxu0 %v209
    %331 = vmatpush.bf16.msra.mxu0 %v205
    %332 = vmatpush.bf16.msra.mxu0 %v201
    %333 = vmatpush.bf16.msra.mxu0 %v197
    %334 = vmatpush.bf16.msra.mxu0 %v193
    %335 = vmatpush.bf16.msra.mxu0 %v189
    %336 = vmatpush.bf16.msra.mxu0 %v185
    %337 = vmatmul.bf16.gmra.mxu0 %v328
    %v338 = vpop.f32.mrf.mxu0
    %v339 = vadd.f32 0.0, %v338
    %v340 = vpop.f32.mrf.mxu0
    %341 = vdwg.mxu0
    %342 = vmatpush.bf16.msra.mxu0 %v214
    %343 = vmatpush.bf16.msra.mxu0 %v210
    %344 = vmatpush.bf16.msra.mxu0 %v206
    %345 = vmatpush.bf16.msra.mxu0 %v202
    %346 = vmatpush.bf16.msra.mxu0 %v198
    %347 = vmatpush.bf16.msra.mxu0 %v194
    %348 = vmatpush.bf16.msra.mxu0 %v190
    %349 = vmatpush.bf16.msra.mxu0 %v186
    %350 = vmatmul.bf16.gmra.mxu0 %v328
    %v351 = vpop.f32.mrf.mxu0
    %v352 = vadd.f32 0.0, %v351
    %v353 = vpop.f32.mrf.mxu0
    %354 = vdwg.mxu0
    %355 = vmatpush.bf16.msra.mxu0 %v215
    %356 = vmatpush.bf16.msra.mxu0 %v211
    %357 = vmatpush.bf16.msra.mxu0 %v207
    %358 = vmatpush.bf16.msra.mxu0 %v203
    %359 = vmatpush.bf16.msra.mxu0 %v199
    %360 = vmatpush.bf16.msra.mxu0 %v195
    %361 = vmatpush.bf16.msra.mxu0 %v191
    %362 = vmatpush.bf16.msra.mxu0 %v187
    %363 = vmatmul.bf16.gmra.mxu0 %v328
    %v364 = vpop.f32.mrf.mxu0
    %v365 = vadd.f32 0.0, %v364
    %v366 = vpop.f32.mrf.mxu0
    %367 = vdwg.mxu0
    %368 = vmatpush.bf16.msra.mxu0 %v216
    %369 = vmatpush.bf16.msra.mxu0 %v212
    %370 = vmatpush.bf16.msra.mxu0 %v208
    %371 = vmatpush.bf16.msra.mxu0 %v204
    %372 = vmatpush.bf16.msra.mxu0 %v200
    %373 = vmatpush.bf16.msra.mxu0 %v196
    %374 = vmatpush.bf16.msra.mxu0 %v192
    %375 = vmatpush.bf16.msra.mxu0 %v188
    %376 = vmatmul.bf16.gmra.mxu0 %v328
    %v377 = vpop.f32.mrf.mxu0
    %v378 = vadd.f32 0.0, %v377
    %v379 = vpop.f32.mrf.mxu0
    %380 = vdwg.mxu0
    %v381 = vadd.f32 %v324, %v339
    %v382 = vadd.f32 %v325, %v352
    %v383 = vadd.f32 %v326, %v365
    %v384 = vadd.f32 %v327, %v378
    %v385 = vmul.f32 %v381, 0.5
    %v386 = vmul.f32 %v382, 0.5
    %v387 = vmul.f32 %v383, 0.5
    %v388 = vtanh.pop %v385
    %v389 = vtanh.pop %v386
    %v390 = vtanh.pop %v387
    %v391 = vmul.f32 %v388, 0.5
    %v392 = vmul.f32 %v389, 0.5
    %v393 = vmul.f32 %v390, 0.5
    %v394 = vadd.f32 %v391, 0.5
    %v395 = vadd.f32 %v392, 0.5
    %v396 = vadd.f32 %v393, 0.5
    %v397 = vtanh.pop %v384
    %v398 = vmul.f32 %v395, %v320
    %v399 = vmul.f32 %v394, %v397
    %v400 = vadd.f32 %v398, %v399
    %v401 = vtanh.pop %v400
    %v402 = vmul.f32 %v396, %v401
    %s403 = scalar_lea.vmem [#allocation4], 64
    %v404 = vld [vmem:[%s403] sm:$0xff]
    %v405 = vld [vmem:[%s403 + $0x8] sm:$0xff]
    %v406 = vld [vmem:[%s403 + $0x10] sm:$0xff]
    %v407 = vld [vmem:[%s403 + $0x18] sm:$0xff]
    %v408 = vpack.c.bf16 %v402, %v402
    %409 = vmatpush.bf16.msra.mxu0 %v213
    %410 = vmatpush.bf16.msra.mxu0 %v209
    %411 = vmatpush.bf16.msra.mxu0 %v205
    %412 = vmatpush.bf16.msra.mxu0 %v201
    %413 = vmatpush.bf16.msra.mxu0 %v197
    %414 = vmatpush.bf16.msra.mxu0 %v193
    %415 = vmatpush.bf16.msra.mxu0 %v189
    %416 = vmatpush.bf16.msra.mxu0 %v185
    %417 = vmatmul.bf16.gmra.mxu0 %v408
    %v418 = vpop.f32.mrf.mxu0
    %v419 = vadd.f32 0.0, %v418
    %v420 = vpop.f32.mrf.mxu0
    %421 = vdwg.mxu0
    %422 = vmatpush.bf16.msra.mxu0 %v214
    %423 = vmatpush.bf16.msra.mxu0 %v210
    %424 = vmatpush.bf16.msra.mxu0 %v206
    %425 = vmatpush.bf16.msra.mxu0 %v202
    %426 = vmatpush.bf16.msra.mxu0 %v198
    %427 = vmatpush.bf16.msra.mxu0 %v194
    %428 = vmatpush.bf16.msra.mxu0 %v190
    %429 = vmatpush.bf16.msra.mxu0 %v186
    %430 = vmatmul.bf16.gmra.mxu0 %v408
    %v431 = vpop.f32.mrf.mxu0
    %v432 = vadd.f32 0.0, %v431
    %v433 = vpop.f32.mrf.mxu0
    %434 = vdwg.mxu0
    %435 = vmatpush.bf16.msra.mxu0 %v215
    %436 = vmatpush.bf16.msra.mxu0 %v211
    %437 = vmatpush.bf16.msra.mxu0 %v207
    %438 = vmatpush.bf16.msra.mxu0 %v203
    %439 = vmatpush.bf16.msra.mxu0 %v199
    %440 = vmatpush.bf16.msra.mxu0 %v195
    %441 = vmatpush.bf16.msra.mxu0 %v191
    %442 = vmatpush.bf16.msra.mxu0 %v187
    %443 = vmatmul.bf16.gmra.mxu0 %v408
    %v444 = vpop.f32.mrf.mxu0
    %v445 = vadd.f32 0.0, %v444
    %v446 = vpop.f32.mrf.mxu0
    %447 = vdwg.mxu0
    %448 = vmatpush.bf16.msra.mxu0 %v216
    %449 = vmatpush.bf16.msra.mxu0 %v212
    %450 = vmatpush.bf16.msra.mxu0 %v208
    %451 = vmatpush.bf16.msra.mxu0 %v204
    %452 = vmatpush.bf16.msra.mxu0 %v200
    %453 = vmatpush.bf16.msra.mxu0 %v196
    %454 = vmatpush.bf16.msra.mxu0 %v192
    %455 = vmatpush.bf16.msra.mxu0 %v188
    %456 = vmatmul.bf16.gmra.mxu0 %v408
    %v457 = vpop.f32.mrf.mxu0
    %v458 = vadd.f32 0.0, %v457
    %v459 = vpop.f32.mrf.mxu0
    %460 = vdwg.mxu0
    %v461 = vadd.f32 %v404, %v419
    %v462 = vadd.f32 %v405, %v432
    %v463 = vadd.f32 %v406, %v445
    %v464 = vadd.f32 %v407, %v458
    %v465 = vmul.f32 %v461, 0.5
    %v466 = vmul.f32 %v462, 0.5
    %v467 = vmul.f32 %v463, 0.5
    %v468 = vtanh.pop %v465
    %v469 = vtanh.pop %v466
    %v470 = vtanh.pop %v467
    %v471 = vmul.f32 %v468, 0.5
    %v472 = vmul.f32 %v469, 0.5
    %v473 = vmul.f32 %v470, 0.5
    %v474 = vadd.f32 %v471, 0.5
    %v475 = vadd.f32 %v472, 0.5
    %v476 = vadd.f32 %v473, 0.5
    %v477 = vtanh.pop %v464
    %v478 = vmul.f32 %v475, %v400
    %v479 = vmul.f32 %v474, %v477
    %v480 = vadd.f32 %v478, %v479
    %v481 = vtanh.pop %v480
    %v482 = vmul.f32 %v476, %v481
    %s483 = scalar_lea.vmem [#allocation4], 96
    %v484 = vld [vmem:[%s483] sm:$0xff]
    %v485 = vld [vmem:[%s483 + $0x8] sm:$0xff]
    %v486 = vld [vmem:[%s483 + $0x10] sm:$0xff]
    %v487 = vld [vmem:[%s483 + $0x18] sm:$0xff]
    %v488 = vpack.c.bf16 %v482, %v482
    %489 = vmatpush.bf16.msra.mxu0 %v213
    %490 = vmatpush.bf16.msra.mxu0 %v209
    %491 = vmatpush.bf16.msra.mxu0 %v205
    %492 = vmatpush.bf16.msra.mxu0 %v201
    %493 = vmatpush.bf16.msra.mxu0 %v197
    %494 = vmatpush.bf16.msra.mxu0 %v193
    %495 = vmatpush.bf16.msra.mxu0 %v189
    %496 = vmatpush.bf16.msra.mxu0 %v185
    %497 = vmatmul.bf16.gmra.mxu0 %v488
    %v498 = vpop.f32.mrf.mxu0
    %v499 = vadd.f32 0.0, %v498
    %v500 = vpop.f32.mrf.mxu0
    %501 = vdwg.mxu0
    %502 = vmatpush.bf16.msra.mxu0 %v214
    %503 = vmatpush.bf16.msra.mxu0 %v210
    %504 = vmatpush.bf16.msra.mxu0 %v206
    %505 = vmatpush.bf16.msra.mxu0 %v202
    %506 = vmatpush.bf16.msra.mxu0 %v198
    %507 = vmatpush.bf16.msra.mxu0 %v194
    %508 = vmatpush.bf16.msra.mxu0 %v190
    %509 = vmatpush.bf16.msra.mxu0 %v186
    %510 = vmatmul.bf16.gmra.mxu0 %v488
    %v511 = vpop.f32.mrf.mxu0
    %v512 = vadd.f32 0.0, %v511
    %v513 = vpop.f32.mrf.mxu0
    %514 = vdwg.mxu0
    %515 = vmatpush.bf16.msra.mxu0 %v215
    %516 = vmatpush.bf16.msra.mxu0 %v211
    %517 = vmatpush.bf16.msra.mxu0 %v207
    %518 = vmatpush.bf16.msra.mxu0 %v203
    %519 = vmatpush.bf16.msra.mxu0 %v199
    %520 = vmatpush.bf16.msra.mxu0 %v195
    %521 = vmatpush.bf16.msra.mxu0 %v191
    %522 = vmatpush.bf16.msra.mxu0 %v187
    %523 = vmatmul.bf16.gmra.mxu0 %v488
    %v524 = vpop.f32.mrf.mxu0
    %v525 = vadd.f32 0.0, %v524
    %v526 = vpop.f32.mrf.mxu0
    %527 = vdwg.mxu0
    %528 = vmatpush.bf16.msra.mxu0 %v216
    %529 = vmatpush.bf16.msra.mxu0 %v212
    %530 = vmatpush.bf16.msra.mxu0 %v208
    %531 = vmatpush.bf16.msra.mxu0 %v204
    %532 = vmatpush.bf16.msra.mxu0 %v200
    %533 = vmatpush.bf16.msra.mxu0 %v196
    %534 = vmatpush.bf16.msra.mxu0 %v192
    %535 = vmatpush.bf16.msra.mxu0 %v188
    %536 = vmatmul.bf16.gmra.mxu0 %v488
    %v537 = vpop.f32.mrf.mxu0
    %v538 = vadd.f32 0.0, %v537
    %v539 = vpop.f32.mrf.mxu0
    %540 = vdwg.mxu0
    %v541 = vadd.f32 %v484, %v499
    %v542 = vadd.f32 %v485, %v512
    %v543 = vadd.f32 %v486, %v525
    %v544 = vadd.f32 %v487, %v538
    %v545 = vmul.f32 %v541, 0.5
    %v546 = vmul.f32 %v542, 0.5
    %v547 = vmul.f32 %v543, 0.5
    %v548 = vtanh.pop %v545
    %v549 = vtanh.pop %v546
    %v550 = vtanh.pop %v547
    %v551 = vmul.f32 %v548, 0.5
    %v552 = vmul.f32 %v549, 0.5
    %v553 = vmul.f32 %v550, 0.5
    %v554 = vadd.f32 %v551, 0.5
    %v555 = vadd.f32 %v552, 0.5
    %v556 = vadd.f32 %v553, 0.5
    %v557 = vtanh.pop %v544
    %v558 = vmul.f32 %v555, %v480
    %v559 = vmul.f32 %v554, %v557
    %v560 = vadd.f32 %v558, %v559
    %v561 = vtanh.pop %v560
    %v562 = vmul.f32 %v556, %v561
    %s563 = scalar_lea.vmem [#allocation4], 128
    %v564 = vld [vmem:[%s563] sm:$0xff]
    %v565 = vld [vmem:[%s563 + $0x8] sm:$0xff]
    %v566 = vld [vmem:[%s563 + $0x10] sm:$0xff]
    %v567 = vld [vmem:[%s563 + $0x18] sm:$0xff]
    %v568 = vpack.c.bf16 %v562, %v562
    %569 = vmatpush.bf16.msra.mxu0 %v213
    %570 = vmatpush.bf16.msra.mxu0 %v209
    %571 = vmatpush.bf16.msra.mxu0 %v205
    %572 = vmatpush.bf16.msra.mxu0 %v201
    %573 = vmatpush.bf16.msra.mxu0 %v197
    %574 = vmatpush.bf16.msra.mxu0 %v193
    %575 = vmatpush.bf16.msra.mxu0 %v189
    %576 = vmatpush.bf16.msra.mxu0 %v185
    %577 = vmatmul.bf16.gmra.mxu0 %v568
    %v578 = vpop.f32.mrf.mxu0
    %v579 = vadd.f32 0.0, %v578
    %v580 = vpop.f32.mrf.mxu0
    %581 = vdwg.mxu0
    %582 = vmatpush.bf16.msra.mxu0 %v214
    %583 = vmatpush.bf16.msra.mxu0 %v210
    %584 = vmatpush.bf16.msra.mxu0 %v206
    %585 = vmatpush.bf16.msra.mxu0 %v202
    %586 = vmatpush.bf16.msra.mxu0 %v198
    %587 = vmatpush.bf16.msra.mxu0 %v194
    %588 = vmatpush.bf16.msra.mxu0 %v190
    %589 = vmatpush.bf16.msra.mxu0 %v186
    %590 = vmatmul.bf16.gmra.mxu0 %v568
    %v591 = vpop.f32.mrf.mxu0
    %v592 = vadd.f32 0.0, %v591
    %v593 = vpop.f32.mrf.mxu0
    %594 = vdwg.mxu0
    %595 = vmatpush.bf16.msra.mxu0 %v215
    %596 = vmatpush.bf16.msra.mxu0 %v211
    %597 = vmatpush.bf16.msra.mxu0 %v207
    %598 = vmatpush.bf16.msra.mxu0 %v203
    %599 = vmatpush.bf16.msra.mxu0 %v199
    %600 = vmatpush.bf16.msra.mxu0 %v195
    %601 = vmatpush.bf16.msra.mxu0 %v191
    %602 = vmatpush.bf16.msra.mxu0 %v187
    %603 = vmatmul.bf16.gmra.mxu0 %v568
    %v604 = vpop.f32.mrf.mxu0
    %v605 = vadd.f32 0.0, %v604
    %v606 = vpop.f32.mrf.mxu0
    %607 = vdwg.mxu0
    %608 = vmatpush.bf16.msra.mxu0 %v216
    %609 = vmatpush.bf16.msra.mxu0 %v212
    %610 = vmatpush.bf16.msra.mxu0 %v208
    %611 = vmatpush.bf16.msra.mxu0 %v204
    %612 = vmatpush.bf16.msra.mxu0 %v200
    %613 = vmatpush.bf16.msra.mxu0 %v196
    %614 = vmatpush.bf16.msra.mxu0 %v192
    %615 = vmatpush.bf16.msra.mxu0 %v188
    %616 = vmatmul.bf16.gmra.mxu0 %v568
    %v617 = vpop.f32.mrf.mxu0
    %v618 = vadd.f32 0.0, %v617
    %v619 = vpop.f32.mrf.mxu0
    %620 = vdwg.mxu0
    %v621 = vadd.f32 %v564, %v579
    %v622 = vadd.f32 %v565, %v592
    %v623 = vadd.f32 %v566, %v605
    %v624 = vadd.f32 %v567, %v618
    %v625 = vmul.f32 %v621, 0.5
    %v626 = vmul.f32 %v622, 0.5
    %v627 = vmul.f32 %v623, 0.5
    %v628 = vtanh.pop %v625
    %v629 = vtanh.pop %v626
    %v630 = vtanh.pop %v627
    %v631 = vmul.f32 %v628, 0.5
    %v632 = vmul.f32 %v629, 0.5
    %v633 = vmul.f32 %v630, 0.5
    %v634 = vadd.f32 %v631, 0.5
    %v635 = vadd.f32 %v632, 0.5
    %v636 = vadd.f32 %v633, 0.5
    %v637 = vtanh.pop %v624
    %v638 = vmul.f32 %v635, %v560
    %v639 = vmul.f32 %v634, %v637
    %v640 = vadd.f32 %v638, %v639
    %v641 = vtanh.pop %v640
    %v642 = vmul.f32 %v636, %v641
    %s643 = scalar_lea.vmem [#allocation4], 160
    %v644 = vld [vmem:[%s643] sm:$0xff]
    %v645 = vld [vmem:[%s643 + $0x8] sm:$0xff]
    %v646 = vld [vmem:[%s643 + $0x10] sm:$0xff]
    %v647 = vld [vmem:[%s643 + $0x18] sm:$0xff]
    %v648 = vpack.c.bf16 %v642, %v642
    %649 = vmatpush.bf16.msra.mxu0 %v213
    %650 = vmatpush.bf16.msra.mxu0 %v209
    %651 = vmatpush.bf16.msra.mxu0 %v205
    %652 = vmatpush.bf16.msra.mxu0 %v201
    %653 = vmatpush.bf16.msra.mxu0 %v197
    %654 = vmatpush.bf16.msra.mxu0 %v193
    %655 = vmatpush.bf16.msra.mxu0 %v189
    %656 = vmatpush.bf16.msra.mxu0 %v185
    %657 = vmatmul.bf16.gmra.mxu0 %v648
    %v658 = vpop.f32.mrf.mxu0
    %v659 = vadd.f32 0.0, %v658
    %v660 = vpop.f32.mrf.mxu0
    %661 = vdwg.mxu0
    %662 = vmatpush.bf16.msra.mxu0 %v214
    %663 = vmatpush.bf16.msra.mxu0 %v210
    %664 = vmatpush.bf16.msra.mxu0 %v206
    %665 = vmatpush.bf16.msra.mxu0 %v202
    %666 = vmatpush.bf16.msra.mxu0 %v198
    %667 = vmatpush.bf16.msra.mxu0 %v194
    %668 = vmatpush.bf16.msra.mxu0 %v190
    %669 = vmatpush.bf16.msra.mxu0 %v186
    %670 = vmatmul.bf16.gmra.mxu0 %v648
    %v671 = vpop.f32.mrf.mxu0
    %v672 = vadd.f32 0.0, %v671
    %v673 = vpop.f32.mrf.mxu0
    %674 = vdwg.mxu0
    %675 = vmatpush.bf16.msra.mxu0 %v215
    %676 = vmatpush.bf16.msra.mxu0 %v211
    %677 = vmatpush.bf16.msra.mxu0 %v207
    %678 = vmatpush.bf16.msra.mxu0 %v203
    %679 = vmatpush.bf16.msra.mxu0 %v199
    %680 = vmatpush.bf16.msra.mxu0 %v195
    %681 = vmatpush.bf16.msra.mxu0 %v191
    %682 = vmatpush.bf16.msra.mxu0 %v187
    %683 = vmatmul.bf16.gmra.mxu0 %v648
    %v684 = vpop.f32.mrf.mxu0
    %v685 = vadd.f32 0.0, %v684
    %v686 = vpop.f32.mrf.mxu0
    %687 = vdwg.mxu0
    %688 = vmatpush.bf16.msra.mxu0 %v216
    %689 = vmatpush.bf16.msra.mxu0 %v212
    %690 = vmatpush.bf16.msra.mxu0 %v208
    %691 = vmatpush.bf16.msra.mxu0 %v204
    %692 = vmatpush.bf16.msra.mxu0 %v200
    %693 = vmatpush.bf16.msra.mxu0 %v196
    %694 = vmatpush.bf16.msra.mxu0 %v192
    %695 = vmatpush.bf16.msra.mxu0 %v188
    %696 = vmatmul.bf16.gmra.mxu0 %v648
    %v697 = vpop.f32.mrf.mxu0
    %v698 = vadd.f32 0.0, %v697
    %v699 = vpop.f32.mrf.mxu0
    %700 = vdwg.mxu0
    %v701 = vadd.f32 %v644, %v659
    %v702 = vadd.f32 %v645, %v672
    %v703 = vadd.f32 %v646, %v685
    %v704 = vadd.f32 %v647, %v698
    %v705 = vmul.f32 %v701, 0.5
    %v706 = vmul.f32 %v702, 0.5
    %v707 = vmul.f32 %v703, 0.5
    %v708 = vtanh.pop %v705
    %v709 = vtanh.pop %v706
    %v710 = vtanh.pop %v707
    %v711 = vmul.f32 %v708, 0.5
    %v712 = vmul.f32 %v709, 0.5
    %v713 = vmul.f32 %v710, 0.5
    %v714 = vadd.f32 %v711, 0.5
    %v715 = vadd.f32 %v712, 0.5
    %v716 = vadd.f32 %v713, 0.5
    %v717 = vtanh.pop %v704
    %v718 = vmul.f32 %v715, %v640
    %v719 = vmul.f32 %v714, %v717
    %v720 = vadd.f32 %v718, %v719
    %v721 = vtanh.pop %v720
    %v722 = vmul.f32 %v716, %v721
    %s723 = scalar_lea.vmem [#allocation4], 192
    %v724 = vld [vmem:[%s723] sm:$0xff]
    %v725 = vld [vmem:[%s723 + $0x8] sm:$0xff]
    %v726 = vld [vmem:[%s723 + $0x10] sm:$0xff]
    %v727 = vld [vmem:[%s723 + $0x18] sm:$0xff]
    %v728 = vpack.c.bf16 %v722, %v722
    %729 = vmatpush.bf16.msra.mxu0 %v213
    %730 = vmatpush.bf16.msra.mxu0 %v209
    %731 = vmatpush.bf16.msra.mxu0 %v205
    %732 = vmatpush.bf16.msra.mxu0 %v201
    %733 = vmatpush.bf16.msra.mxu0 %v197
    %734 = vmatpush.bf16.msra.mxu0 %v193
    %735 = vmatpush.bf16.msra.mxu0 %v189
    %736 = vmatpush.bf16.msra.mxu0 %v185
    %737 = vmatmul.bf16.gmra.mxu0 %v728
    %v738 = vpop.f32.mrf.mxu0
    %v739 = vadd.f32 0.0, %v738
    %v740 = vpop.f32.mrf.mxu0
    %741 = vdwg.mxu0
    %742 = vmatpush.bf16.msra.mxu0 %v214
    %743 = vmatpush.bf16.msra.mxu0 %v210
    %744 = vmatpush.bf16.msra.mxu0 %v206
    %745 = vmatpush.bf16.msra.mxu0 %v202
    %746 = vmatpush.bf16.msra.mxu0 %v198
    %747 = vmatpush.bf16.msra.mxu0 %v194
    %748 = vmatpush.bf16.msra.mxu0 %v190
    %749 = vmatpush.bf16.msra.mxu0 %v186
    %750 = vmatmul.bf16.gmra.mxu0 %v728
    %v751 = vpop.f32.mrf.mxu0
    %v752 = vadd.f32 0.0, %v751
    %v753 = vpop.f32.mrf.mxu0
    %754 = vdwg.mxu0
    %755 = vmatpush.bf16.msra.mxu0 %v215
    %756 = vmatpush.bf16.msra.mxu0 %v211
    %757 = vmatpush.bf16.msra.mxu0 %v207
    %758 = vmatpush.bf16.msra.mxu0 %v203
    %759 = vmatpush.bf16.msra.mxu0 %v199
    %760 = vmatpush.bf16.msra.mxu0 %v195
    %761 = vmatpush.bf16.msra.mxu0 %v191
    %762 = vmatpush.bf16.msra.mxu0 %v187
    %763 = vmatmul.bf16.gmra.mxu0 %v728
    %v764 = vpop.f32.mrf.mxu0
    %v765 = vadd.f32 0.0, %v764
    %v766 = vpop.f32.mrf.mxu0
    %767 = vdwg.mxu0
    %768 = vmatpush.bf16.msra.mxu0 %v216
    %769 = vmatpush.bf16.msra.mxu0 %v212
    %770 = vmatpush.bf16.msra.mxu0 %v208
    %771 = vmatpush.bf16.msra.mxu0 %v204
    %772 = vmatpush.bf16.msra.mxu0 %v200
    %773 = vmatpush.bf16.msra.mxu0 %v196
    %774 = vmatpush.bf16.msra.mxu0 %v192
    %775 = vmatpush.bf16.msra.mxu0 %v188
    %776 = vmatmul.bf16.gmra.mxu0 %v728
    %v777 = vpop.f32.mrf.mxu0
    %v778 = vadd.f32 0.0, %v777
    %v779 = vpop.f32.mrf.mxu0
    %780 = vdwg.mxu0
    %v781 = vadd.f32 %v724, %v739
    %v782 = vadd.f32 %v725, %v752
    %v783 = vadd.f32 %v726, %v765
    %v784 = vadd.f32 %v727, %v778
    %v785 = vmul.f32 %v781, 0.5
    %v786 = vmul.f32 %v782, 0.5
    %v787 = vmul.f32 %v783, 0.5
    %v788 = vtanh.pop %v785
    %v789 = vtanh.pop %v786
    %v790 = vtanh.pop %v787
    %v791 = vmul.f32 %v788, 0.5
    %v792 = vmul.f32 %v789, 0.5
    %v793 = vmul.f32 %v790, 0.5
    %v794 = vadd.f32 %v791, 0.5
    %v795 = vadd.f32 %v792, 0.5
    %v796 = vadd.f32 %v793, 0.5
    %v797 = vtanh.pop %v784
    %v798 = vmul.f32 %v795, %v720
    %v799 = vmul.f32 %v794, %v797
    %v800 = vadd.f32 %v798, %v799
    %v801 = vtanh.pop %v800
    %v802 = vmul.f32 %v796, %v801
    %s803 = scalar_lea.vmem [#allocation4], 224
    %v804 = vld [vmem:[%s803] sm:$0xff]
    %v805 = vld [vmem:[%s803 + $0x8] sm:$0xff]
    %v806 = vld [vmem:[%s803 + $0x10] sm:$0xff]
    %v807 = vld [vmem:[%s803 + $0x18] sm:$0xff]
    %v808 = vpack.c.bf16 %v802, %v802
    %809 = vmatpush.bf16.msra.mxu0 %v213
    %810 = vmatpush.bf16.msra.mxu0 %v209
    %811 = vmatpush.bf16.msra.mxu0 %v205
    %812 = vmatpush.bf16.msra.mxu0 %v201
    %813 = vmatpush.bf16.msra.mxu0 %v197
    %814 = vmatpush.bf16.msra.mxu0 %v193
    %815 = vmatpush.bf16.msra.mxu0 %v189
    %816 = vmatpush.bf16.msra.mxu0 %v185
    %817 = vmatmul.bf16.gmra.mxu0 %v808
    %v818 = vpop.f32.mrf.mxu0
    %v819 = vadd.f32 0.0, %v818
    %v820 = vpop.f32.mrf.mxu0
    %821 = vdwg.mxu0
    %822 = vmatpush.bf16.msra.mxu0 %v214
    %823 = vmatpush.bf16.msra.mxu0 %v210
    %824 = vmatpush.bf16.msra.mxu0 %v206
    %825 = vmatpush.bf16.msra.mxu0 %v202
    %826 = vmatpush.bf16.msra.mxu0 %v198
    %827 = vmatpush.bf16.msra.mxu0 %v194
    %828 = vmatpush.bf16.msra.mxu0 %v190
    %829 = vmatpush.bf16.msra.mxu0 %v186
    %830 = vmatmul.bf16.gmra.mxu0 %v808
    %v831 = vpop.f32.mrf.mxu0
    %v832 = vadd.f32 0.0, %v831
    %v833 = vpop.f32.mrf.mxu0
    %834 = vdwg.mxu0
    %835 = vmatpush.bf16.msra.mxu0 %v215
    %836 = vmatpush.bf16.msra.mxu0 %v211
    %837 = vmatpush.bf16.msra.mxu0 %v207
    %838 = vmatpush.bf16.msra.mxu0 %v203
    %839 = vmatpush.bf16.msra.mxu0 %v199
    %840 = vmatpush.bf16.msra.mxu0 %v195
    %841 = vmatpush.bf16.msra.mxu0 %v191
    %842 = vmatpush.bf16.msra.mxu0 %v187
    %843 = vmatmul.bf16.gmra.mxu0 %v808
    %v844 = vpop.f32.mrf.mxu0
    %v845 = vadd.f32 0.0, %v844
    %v846 = vpop.f32.mrf.mxu0
    %847 = vdwg.mxu0
    %848 = vmatpush.bf16.msra.mxu0 %v216
    %849 = vmatpush.bf16.msra.mxu0 %v212
    %850 = vmatpush.bf16.msra.mxu0 %v208
    %851 = vmatpush.bf16.msra.mxu0 %v204
    %852 = vmatpush.bf16.msra.mxu0 %v200
    %853 = vmatpush.bf16.msra.mxu0 %v196
    %854 = vmatpush.bf16.msra.mxu0 %v192
    %855 = vmatpush.bf16.msra.mxu0 %v188
    %856 = vmatmul.bf16.gmra.mxu0 %v808
    %v857 = vpop.f32.mrf.mxu0
    %v858 = vadd.f32 0.0, %v857
    %v859 = vpop.f32.mrf.mxu0
    %860 = vdwg.mxu0
    %v861 = vadd.f32 %v804, %v819
    %v862 = vadd.f32 %v805, %v832
    %v863 = vadd.f32 %v806, %v845
    %v864 = vadd.f32 %v807, %v858
    %v865 = vmul.f32 %v861, 0.5
    %v866 = vmul.f32 %v862, 0.5
    %v867 = vmul.f32 %v863, 0.5
    %v868 = vtanh.pop %v865
    %v869 = vtanh.pop %v866
    %v870 = vtanh.pop %v867
    %v871 = vmul.f32 %v868, 0.5
    %v872 = vmul.f32 %v869, 0.5
    %v873 = vmul.f32 %v870, 0.5
    %v874 = vadd.f32 %v871, 0.5
    %v875 = vadd.f32 %v872, 0.5
    %v876 = vadd.f32 %v873, 0.5
    %v877 = vtanh.pop %v864
    %v878 = vmul.f32 %v875, %v800
    %v879 = vmul.f32 %v874, %v877
    %v880 = vadd.f32 %v878, %v879
    %v881 = vtanh.pop %v880
    %v882 = vmul.f32 %v876, %v881
    %883 = vst [vmem:[#allocation2] sm:$0xff] %v882
    %884 = vst [vmem:[#allocation3] sm:$0xff] %v880
    // Predicated region
    $region22: #{tpu_custom_call.1} parent=1 // pred_check
      %p885 = pneg %p44
    $region23: #{tpu_custom_call.1} parent=1 // pred_check_branch
      %887 = sbr.rel (%p885) target = $region25
    $region24: #{tpu_custom_call.1} parent=1 // pred_region
      %888 = vst [vmem:[#allocation9] sm:$0xff] %v882
    $region25: #{tpu_custom_call.1} parent=1 // pred_fallthru
      _
    // Predicated region
    $region26: #{tpu_custom_call.1} parent=1 // pred_check
      _
    $region27: #{tpu_custom_call.1} parent=1 // pred_check_branch
      %890 = sbr.rel (0) target = $region29
    $region28: #{tpu_custom_call.1} parent=1 // pred_region
      %892 = vsyncadd [#allocation6], 0
      %s894 = sshll.u32 [#allocation9], 4
      %s895 = int_to_ptr.vmem [resolvable:$true] %s894
      %s896 = sshll.u32 %s2, 4
      %s897 = int_to_ptr.hbm [resolvable:$true] %s896
      %899 = dma.vmem_to_hbm [thread:$0]  %s895, 128, %s897, [#allocation6]
    $region29: #{tpu_custom_call.1} parent=1 // pred_fallthru
      _
    // Predicated region
    $region30: #{tpu_custom_call.1} parent=1 // pred_check
      _
    $region31: #{tpu_custom_call.1} parent=1 // pred_check_branch
      %901 = sbr.rel (0) target = $region33
    $region32: #{tpu_custom_call.1} parent=1 // pred_region
      %903 = dma.done [#allocation6], 128
    $region33: #{tpu_custom_call.1} parent=1 // pred_fallthru
      _
    %904 = vsyncpa [#allocation5], 1
    %905 = vsyncpa [#allocation8], 1
    %906 = vsyncpa [#allocation6], 1

</llo_original>
